<compile_context>
chip_gen: v7x
topology: tpu7x:2x2x1
jax: 0.10.0
libtpu: 0.0.40
codegen_flags: <defaults>
</compile_context>

<pallas_src>
import jax
import jax.numpy as jnp
from jax.experimental import pallas as pl
from jax.experimental.pallas import tpu as pltpu


# ---------------------------------------------------------------------------
# Constant harmonic embedding (mirrors the torch buffer, built at trace time)
# ---------------------------------------------------------------------------
def seasonal_embedding(target_len, P=24):
    N = P // 2
    t = jnp.arange(target_len, dtype=jnp.float32)[None, :]          # (1, T)
    i = jnp.arange(1, N + 1, dtype=jnp.float32)[:, None] / P        # (N, 1)
    theta = i * t                                                    # (N, T)
    emb = jnp.zeros((2 * N, target_len), dtype=jnp.float32)
    emb = emb.at[0::2, :].set(jnp.sin(theta))
    emb = emb.at[1::2, :].set(jnp.cos(theta))
    return emb  # (feature = 2N, time = target_len)


# ---------------------------------------------------------------------------
# Pallas kernel: fused multiply + feature (sublane) reduction for a time tile
# ---------------------------------------------------------------------------
def seasonal_basis_kernel(x_ref, emb_ref, out_ref):
    x = x_ref[...]                 # (B, F, block_t)  — F on sublanes, T on lanes
    e = emb_ref[...]               # (F, block_t)     — broadcasts over batch only
    # y[b, 0, t] = sum_f x[b, f, t] * e[f, t]   (sublane reduce, lane-dense store)
    out_ref[...] = jnp.sum(x * e, axis=1, keepdims=True)   # (B, 1, block_t)


# ---------------------------------------------------------------------------
# Tile-size policy
# ---------------------------------------------------------------------------
def _pick_block_t(T, B, F, vmem_budget_bytes=8 << 20):
    """Largest time tile that fits the VMEM budget (double-buffered f32 streams)."""
    bytes_per_t = 2 * (B * F + F + B) * 4          # x + emb + out, double-buffered
    cap = max(128, vmem_budget_bytes // max(bytes_per_t, 1))
    if T <= cap:
        block_t = T                                # whole problem in one step
    else:
        block_t = (cap // 128) * 128               # last-dim must be 128-aligned when tiled
    # Keep >= 2 parallel grid steps when T allows it so both v7x TensorCores work.
    if T >= 256:
        block_t = min(block_t, 128 * pl.cdiv(pl.cdiv(T, 2), 128))
    return block_t


# ---------------------------------------------------------------------------
# Wrapper
# ---------------------------------------------------------------------------
def seasonal_basis_forward(x, emb, *, block_t=None):
    """x: (time_step, batch, feature); emb: (feature, time_step). Returns (B, 1, T)."""
    T, B, F = x.shape
    assert emb.shape == (F, T), (emb.shape, (F, T))

    # Same relayout the torch module performs (x.permute(1, 2, 0)); done once,
    # outside the kernel, so the kernel sees the lane-friendly (B, F, T) layout.
    x_bft = jnp.transpose(x, (1, 2, 0))                   # (B, F, T)

    if block_t is None:
        block_t = _pick_block_t(T, B, F)
    grid = (pl.cdiv(T, block_t),)                         # ragged tail handled by overhang

    return pl.pallas_call(
        seasonal_basis_kernel,
        out_shape=jax.ShapeDtypeStruct((B, 1, T), jnp.float32),
        grid=grid,
        in_specs=[
            pl.BlockSpec((B, F, block_t), lambda i: (0, 0, i)),   # activations
            pl.BlockSpec((F, block_t), lambda i: (0, i)),         # constant embedding
        ],
        out_specs=pl.BlockSpec((B, 1, block_t), lambda i: (0, 0, i)),
        compiler_params=pltpu.CompilerParams(dimension_semantics=("parallel",)),
    )(x_bft, emb)


# ---------------------------------------------------------------------------
# Pure-JAX reference (mirrors the torch forward exactly)
# ---------------------------------------------------------------------------
def reference_forward(x, emb):
    xp = jnp.transpose(x, (1, 2, 0))                          # (B, F, T)
    return jnp.sum(xp * emb[None, :, :], axis=1)[:, None, :]  # (B, 1, T)


if __name__ == "__main__":
    P = 24                  # period (module default)
    TARGET_LEN = 16         # time_step == target_len
    BATCH = 4
    FEATURE = (P // 2) * 2  # == P == 24

    key = jax.random.PRNGKey(0)
    x = jax.random.normal(key, (TARGET_LEN, BATCH, FEATURE), jnp.float32)
    emb = seasonal_embedding(TARGET_LEN, P)                   # (FEATURE, TARGET_LEN)

    y = seasonal_basis_forward(x, emb)
    y = jax.block_until_ready(y)

    ref = jax.block_until_ready(reference_forward(x, emb))

    assert y.shape == (BATCH, 1, TARGET_LEN), y.shape
    max_err = float(jnp.max(jnp.abs(y - ref)))
    assert max_err < 1e-4, f"max abs error {max_err}"
    print("KERNEL_OK")
</pallas_src>

<mosaic_0001>
module attributes {stable_mosaic.version = 11 : i64} {
  func.func @seasonal_basis_kernel(%arg0: i32, %arg1: memref<4x24x16xf32, #tpu.memory_space<vmem>>, %arg2: memref<24x16xf32, #tpu.memory_space<vmem>>, %arg3: memref<4x1x16xf32, #tpu.memory_space<vmem>>) attributes {dimension_semantics = [#tpu.dimension_semantics<parallel>], iteration_bounds = array<i64: 1>, scalar_prefetch = 0 : i64, scratch_operands = 0 : i64, tpu.core_type = #tpu.core_type<tc>, window_params = [{transform_indices = @transform_0, window_bounds = array<i64: 4, 24, 16>}, {transform_indices = @transform_1, window_bounds = array<i64: 24, 16>}, {transform_indices = @transform_2, window_bounds = array<i64: 4, 1, 16>}]} {
    %c0 = arith.constant 0 : index
    %c0_0 = arith.constant 0 : index
    %c0_1 = arith.constant 0 : index
    %0 = vector.load %arg1[%c0, %c0_0, %c0_1] : memref<4x24x16xf32, #tpu.memory_space<vmem>>, vector<4x24x16xf32>
    %c0_2 = arith.constant 0 : index
    %c0_3 = arith.constant 0 : index
    %1 = vector.load %arg2[%c0_2, %c0_3] : memref<24x16xf32, #tpu.memory_space<vmem>>, vector<24x16xf32>
    %2 = vector.shape_cast %1 : vector<24x16xf32> to vector<1x24x16xf32>
    %3 = vector.broadcast %2 : vector<1x24x16xf32> to vector<4x24x16xf32>
    %4 = arith.mulf %0, %3 : vector<4x24x16xf32>
    %cst = arith.constant dense<0.000000e+00> : vector<4x16xf32>
    %5 = vector.multi_reduction <add>, %4, %cst [1] : vector<4x24x16xf32> to vector<4x16xf32>
    %6 = vector.shape_cast %5 : vector<4x16xf32> to vector<4x1x16xf32>
    %c0_4 = arith.constant 0 : index
    %c0_5 = arith.constant 0 : index
    %c0_6 = arith.constant 0 : index
    %7 = vector.load %arg3[%c0_4, %c0_5, %c0_6] : memref<4x1x16xf32, #tpu.memory_space<vmem>>, vector<4x1x16xf32>
    tpu.vector_store %arg3[%c0_4, %c0_5, %c0_6], %6 {strides = array<i32>} : memref<4x1x16xf32, #tpu.memory_space<vmem>>, vector<4x1x16xf32>,
    return
  }
  func.func @transform_0(%arg0: i32) -> (i32, i32, i32) {
    %c0_i32 = arith.constant 0 : i32
    %c0_i32_0 = arith.constant 0 : i32
    %c0_i32_1 = arith.constant 0 : i32
    return %c0_i32, %c0_i32_0, %arg0 : i32, i32, i32
  }
  func.func @transform_1(%arg0: i32) -> (i32, i32) {
    %c0_i32 = arith.constant 0 : i32
    %c0_i32_0 = arith.constant 0 : i32
    return %c0_i32, %arg0 : i32, i32
  }
  func.func @transform_2(%arg0: i32) -> (i32, i32, i32) {
    %c0_i32 = arith.constant 0 : i32
    %c0_i32_0 = arith.constant 0 : i32
    %c0_i32_1 = arith.constant 0 : i32
    return %c0_i32, %c0_i32_0, %arg0 : i32, i32, i32
  }
}

</mosaic_0001>

<llo_original>
// kernel: tpu_custom_call.1
$region0: #{tpu_custom_call.1}
  #allocation0 [shape = 'u32[]', space=smem, size = 0x4, offset = 0x4, fixed_abs, tag = 'smem constant byte address 0x4 - core index']
  #allocation1 [shape = 'u32[144,128]{1,0:T(1,128)}', space=vmem, size = 0x12000, scoped, tag = 'internal scratch']
  %s0 = inlined_call_operand.vmem [shape: f32[4,24,16], index: 0, kind: input, shape index: {}]
  %s1 = inlined_call_operand.vmem [shape: f32[24,16], index: 1, kind: input, shape index: {}]
  %s2 = inlined_call_operand.hbm [shape: f32[4,1,16], index: 2, kind: output, shape index: {}]
  %s3 = sld [smem:[#allocation0]]
  $region18: #{tpu_custom_call.1} parent=0
    _
  %s5 = ssub.s32 1, %s3
  %s6 = scalar_select 0, %s5, %s3
  $region1: #{tpu_custom_call.1} parent=0
    #allocation2 [shape = 'u8[2048]{0}', space=vmem, size = 0x800, scoped, tag = 'output window, operand 0, single buffered']
    #allocation3 [shape = 's32[1]{0}', space=sflag, size = 0x4, scoped, tag = 'scoped memory for tpu_custom_call.1']
    %7 = vsyncpa [#allocation3], 0
    // Predicated region
    $region2: #{tpu_custom_call.1} parent=1 // pred_check
      _
    $region3: #{tpu_custom_call.1} parent=1 // pred_check_branch
      %9 = sbr.rel (0) target = $region5
    $region4: #{tpu_custom_call.1} parent=1 // pred_region
      _
    $region5: #{tpu_custom_call.1} parent=1 // pred_fallthru
      _
    // Predicated region
    $region6: #{tpu_custom_call.1} parent=1 // pred_check
      _
    $region7: #{tpu_custom_call.1} parent=1 // pred_check_branch
      %11 = sbr.rel (0) target = $region9
    $region8: #{tpu_custom_call.1} parent=1 // pred_region
      _
    $region9: #{tpu_custom_call.1} parent=1 // pred_fallthru
      _
    %v12 = vld [vmem:[%s0] sm:$0xff]
    %v13 = vld [vmem:[%s0 + $0x8] sm:$0xff]
    %v14 = vld [vmem:[%s0 + $0x10] sm:$0xff]
    %v15 = vld [vmem:[%s0 + $0x18] sm:$0xff]
    %v16 = vld [vmem:[%s0 + $0x20] sm:$0xff]
    %v17 = vld [vmem:[%s0 + $0x28] sm:$0xff]
    %v18 = vld [vmem:[%s0 + $0x30] sm:$0xff]
    %v19 = vld [vmem:[%s0 + $0x38] sm:$0xff]
    %v20 = vld [vmem:[%s0 + $0x40] sm:$0xff]
    %v21 = vld [vmem:[%s0 + $0x48] sm:$0xff]
    %v22 = vld [vmem:[%s0 + $0x50] sm:$0xff]
    %v23 = vld [vmem:[%s0 + $0x58] sm:$0xff]
    %v24 = vld [vmem:[%s1] sm:$0xff]
    %v25 = vld [vmem:[%s1 + $0x8] sm:$0xff]
    %v26 = vld [vmem:[%s1 + $0x10] sm:$0xff]
    %v27 = vmul.f32 %v12, %v24
    %v28 = vmul.f32 %v13, %v25
    %v29 = vmul.f32 %v14, %v26
    %v30 = vmul.f32 %v15, %v24
    %v31 = vmul.f32 %v16, %v25
    %v32 = vmul.f32 %v17, %v26
    %v33 = vmul.f32 %v18, %v24
    %v34 = vmul.f32 %v19, %v25
    %v35 = vmul.f32 %v20, %v26
    %v36 = vmul.f32 %v21, %v24
    %v37 = vmul.f32 %v22, %v25
    %v38 = vmul.f32 %v23, %v26
    %vm39 = vcmask 130048
    %v40 = vsel %vm39, %v27, 0.0
    %v41 = vsel %vm39, %v28, 0.0
    %v42 = vadd.f32 %v40, %v41
    %v43 = vsel %vm39, %v29, 0.0
    %v44 = vadd.f32 %v42, %v43
    %v45 = vrot.slane %v44, 4
    %v46 = vadd.f32 %v44, %v45
    %v47 = vrot.slane %v46, 2
    %v48 = vadd.f32 %v46, %v47
    %v49 = vrot.slane %v48, 1
    %v50 = vadd.f32 %v48, %v49
    %v51 = vsel %vm39, %v30, 0.0
    %v52 = vsel %vm39, %v31, 0.0
    %v53 = vadd.f32 %v51, %v52
    %v54 = vsel %vm39, %v32, 0.0
    %v55 = vadd.f32 %v53, %v54
    %v56 = vrot.slane %v55, 4
    %v57 = vadd.f32 %v55, %v56
    %v58 = vrot.slane %v57, 2
    %v59 = vadd.f32 %v57, %v58
    %v60 = vrot.slane %v59, 1
    %v61 = vadd.f32 %v59, %v60
    %v62 = vsel %vm39, %v33, 0.0
    %v63 = vsel %vm39, %v34, 0.0
    %v64 = vadd.f32 %v62, %v63
    %v65 = vsel %vm39, %v35, 0.0
    %v66 = vadd.f32 %v64, %v65
    %v67 = vrot.slane %v66, 4
    %v68 = vadd.f32 %v66, %v67
    %v69 = vrot.slane %v68, 2
    %v70 = vadd.f32 %v68, %v69
    %v71 = vrot.slane %v70, 1
    %v72 = vadd.f32 %v70, %v71
    %v73 = vsel %vm39, %v36, 0.0
    %v74 = vsel %vm39, %v37, 0.0
    %v75 = vadd.f32 %v73, %v74
    %v76 = vsel %vm39, %v38, 0.0
    %v77 = vadd.f32 %v75, %v76
    %v78 = vrot.slane %v77, 4
    %v79 = vadd.f32 %v77, %v78
    %v80 = vrot.slane %v79, 2
    %v81 = vadd.f32 %v79, %v80
    %v82 = vrot.slane %v81, 1
    %v83 = vadd.f32 %v81, %v82
    %vm84 = vcmask 122880
    %85 = vst.msk [vmem:[#allocation2] sm:$0x1] %vm84, %v50
    %86 = vst.msk [vmem:[#allocation2 + $0x1] sm:$0x1] %vm84, %v61
    %87 = vst.msk [vmem:[#allocation2 + $0x2] sm:$0x1] %vm84, %v72
    %88 = vst.msk [vmem:[#allocation2 + $0x3] sm:$0x1] %vm84, %v83
    // Predicated region
    $region10: #{tpu_custom_call.1} parent=1 // pred_check
      _
    $region11: #{tpu_custom_call.1} parent=1 // pred_check_branch
      %90 = sbr.rel (0) target = $region13
    $region12: #{tpu_custom_call.1} parent=1 // pred_region
      %s92 = ssub.s32 64, 64
      %93 = vsyncadd [#allocation3], %s92
      %s94 = sshll.u32 [#allocation2], 4
      %s95 = int_to_ptr.vmem [resolvable:$true] %s94
      %100 = dma.vmem_to_hbm [thread:$0]  %s95, 64, %s2, [#allocation3], 16, 16, 1
    $region13: #{tpu_custom_call.1} parent=1 // pred_fallthru
      _
    // Predicated region
    $region14: #{tpu_custom_call.1} parent=1 // pred_check
      _
    $region15: #{tpu_custom_call.1} parent=1 // pred_check_branch
      %102 = sbr.rel (0) target = $region17
    $region16: #{tpu_custom_call.1} parent=1 // pred_region
      %103 = dma.done [#allocation3], 64
    $region17: #{tpu_custom_call.1} parent=1 // pred_fallthru
      _
    %104 = vsyncpa [#allocation3], 1

</llo_original>
